<compile_context>
chip_gen: v7x
topology: tpu7x:2x2x1
jax: 0.10.0
libtpu: 0.0.40
codegen_flags: <defaults>
</compile_context>

<pallas_src>
import jax
import jax.numpy as jnp
from jax import lax
from jax.experimental import pallas as pl
from jax.experimental.pallas import tpu as pltpu

ALPHA = 1.0   # args['alpha']
GAMMA = 2.0   # args['gamma'] -- unused: focal-loss branch is commented out in the reference


# ---------------------------------------------------------------------------
# Kernels
# ---------------------------------------------------------------------------
def _softplus(x):
    # numerically stable softplus: max(x, 0) + log(1 + exp(-|x|))
    return jnp.maximum(x, 0.0) + jnp.log(1.0 + jnp.exp(-jnp.abs(x)))


def _head_logit_diffs(rep_ref, w1_ref, b1_ref, wse_ref, bse_ref):
    """Shared head. rep_ref is a NATURAL-layout (T, H) bf16 tile.

    Returns lane-dense (1, T) f32 logit differences (d_start, d_end)."""
    # encoder_linear matmul: contract both last dims (W1^T @ rep^T) so the
    # result is already lane-dense (H, T) -- no transpose anywhere.
    h = lax.dot_general(
        w1_ref[...], rep_ref[...],
        dimension_numbers=(((1,), (1,)), ((), ())),
        preferred_element_type=jnp.float32,
    ) + b1_ref[...]                                            # (H, T) f32
    # Tanh + downcast fused in bf16 (feeds the second MXU pass directly).
    h = jnp.tanh(h.astype(jnp.bfloat16))                       # (H, T) bf16
    # fused start/end heads: rows = [s0, s1, e0, e1]
    logits = jnp.dot(wse_ref[...], h,
                     preferred_element_type=jnp.float32) + bse_ref[...]   # (4, T) f32
    d_s = logits[1:2, :] - logits[0:1, :]                      # (1, T)
    d_e = logits[3:4, :] - logits[2:3, :]
    return d_s, d_e


def mrc_infer_kernel(rep_ref, w1_ref, b1_ref, wse_ref, bse_ref, probs_ref):
    d_s, d_e = _head_logit_diffs(rep_ref, w1_ref, b1_ref, wse_ref, bse_ref)
    # 2-class softmax == sigmoid of the logit difference (pure VPU/EUP math).
    p_s1 = 1.0 / (1.0 + jnp.exp(-d_s))
    p_e1 = 1.0 / (1.0 + jnp.exp(-d_e))
    probs_ref[...] = jnp.concatenate([p_s1, p_e1], axis=0)     # one full-block store


def mrc_train_kernel(rep_ref, w1_ref, b1_ref, wse_ref, bse_ref, aux_ref, loss_ref):
    d_s, d_e = _head_logit_diffs(rep_ref, w1_ref, b1_ref, wse_ref, bse_ref)

    sl = aux_ref[0:1, :]                                       # start labels in {0,1}
    el = aux_ref[1:2, :]                                       # end labels in {0,1}
    mk = aux_ref[2:3, :]                                       # seq_mask (0 for padding)

    # CrossEntropyLoss(reduction='none') on 2 classes:
    #   ce = logsumexp(l0, l1) - l_target = softplus(d) - target*d
    ce_s = _softplus(d_s) - sl * d_s
    ce_e = _softplus(d_e) - el * d_e

    masked = (ce_s + ce_e) * mk                                # masked per-token loss
    nnz_ind = (mk != 0.0).astype(jnp.float32)                  # nnz indicator
    loss_ref[...] = jnp.concatenate([masked, nnz_ind], axis=0)  # one full-block store


# ---------------------------------------------------------------------------
# Wrappers
# ---------------------------------------------------------------------------
def _round_up(x, m):
    return ((x + m - 1) // m) * m


def _tiles(n):
    # 1024-row tiles at production sizes (rep block 2 MiB @ H=1024, double
    # buffered; f32 hidden temp 4 MiB; resident weights ~2 MiB -> well under the
    # 32 MiB scoped-VMEM default and v7x's 64 MiB physical VMEM).  Small inputs
    # use a single lane-aligned tile.
    tile = 1024 if n >= 1024 else _round_up(n, 128)
    return tile, _round_up(n, tile)


def _prep_weights(params):
    h = params["w1"].shape[0]
    w1t = params["w1"].T.astype(jnp.bfloat16)                               # (H, H) = W1^T
    b1c = params["b1"].reshape(h, 1).astype(jnp.float32)                    # (H, 1)
    wse_t = jnp.concatenate(
        [params["w_start"], params["w_end"]], axis=1).T.astype(jnp.bfloat16)  # (4, H)
    bse_c = jnp.concatenate(
        [params["b_start"], params["b_end"]], axis=1).reshape(4, 1).astype(jnp.float32)
    return w1t, b1c, wse_t, bse_c


def _common_in_specs(H, tile):
    return [
        pl.BlockSpec((tile, H), lambda i: (i, 0)),   # rep tile (natural layout)
        pl.BlockSpec((H, H), lambda i: (0, 0)),      # W1^T (resident)
        pl.BlockSpec((H, 1), lambda i: (0, 0)),      # b1   (resident)
        pl.BlockSpec((4, H), lambda i: (0, 0)),      # fused start/end weights
        pl.BlockSpec((4, 1), lambda i: (0, 0)),      # fused start/end biases
    ]


def _pad_rows(rep2d, padN):
    N = rep2d.shape[0]
    if padN == N:
        return rep2d.astype(jnp.bfloat16)
    return jnp.pad(rep2d.astype(jnp.bfloat16), ((0, padN - N), (0, 0)))


def mrc_head_infer(rep2d, params):
    """rep2d: (N, H) bf16/f32 -> (start_probs (N,2), end_probs (N,2))."""
    N, H = rep2d.shape
    tile, padN = _tiles(N)
    rep_pad = _pad_rows(rep2d, padN)
    w1t, b1c, wse_t, bse_c = _prep_weights(params)

    probs = pl.pallas_call(
        mrc_infer_kernel,
        out_shape=jax.ShapeDtypeStruct((2, padN), jnp.float32),
        grid=(padN // tile,),
        in_specs=_common_in_specs(H, tile),
        out_specs=pl.BlockSpec((2, tile), lambda i: (0, i)),
        compiler_params=pltpu.CompilerParams(dimension_semantics=("parallel",)),
    )(rep_pad, w1t, b1c, wse_t, bse_c)

    p_s1 = probs[0, :N]
    p_e1 = probs[1, :N]
    sp = jnp.stack([1.0 - p_s1, p_s1], axis=-1)                 # (N, 2)
    ep = jnp.stack([1.0 - p_e1, p_e1], axis=-1)                 # (N, 2)
    return sp, ep


def mrc_head_loss(rep2d, params, start_label, end_label, seq_mask):
    """rep2d: (N, H); labels/mask flattened to (N,). Returns scalar loss."""
    N, H = rep2d.shape
    tile, padN = _tiles(N)
    rep_pad = _pad_rows(rep2d, padN)
    # labels assumed binary {0,1} (2-class head); packed lane-dense with the mask.
    aux = jnp.stack(
        [start_label.reshape(-1).astype(jnp.float32),
         end_label.reshape(-1).astype(jnp.float32),
         seq_mask.reshape(-1).astype(jnp.float32)], axis=0)      # (3, N)
    if padN != N:
        aux = jnp.pad(aux, ((0, 0), (0, padN - N)))              # padded mask = 0
    w1t, b1c, wse_t, bse_c = _prep_weights(params)

    lossrows = pl.pallas_call(
        mrc_train_kernel,
        out_shape=jax.ShapeDtypeStruct((2, padN), jnp.float32),
        grid=(padN // tile,),
        in_specs=_common_in_specs(H, tile)
        + [pl.BlockSpec((3, tile), lambda i: (0, i))],
        out_specs=pl.BlockSpec((2, tile), lambda i: (0, i)),
        compiler_params=pltpu.CompilerParams(dimension_semantics=("parallel",)),
    )(rep_pad, w1t, b1c, wse_t, bse_c, aux)

    # Global finalize in the wrapper: keeps the grid axis parallel, avoids any
    # cross-lane reduction in-kernel, and guards the divide.
    total = jnp.sum(lossrows[0])
    nnz = jnp.maximum(jnp.sum(lossrows[1]), 1.0)
    return ALPHA * total / nnz


def toy_encoder(input_ids, input_mask, input_seg, params):
    # Deterministic stand-in for the pretrained RoBERTa encoder (see TODO at top).
    # Emits bf16 directly so the head kernel needs no extra cast / layout pass.
    B, S = input_ids.shape
    rep = (params["tok_emb"][input_ids]
           + params["seg_emb"][input_seg]
           + params["pos_emb"][None, :S, :])
    rep = rep * input_mask[..., None].astype(rep.dtype)
    return rep                                                  # (B, S, H) bf16


def my_model_forward(params, input_ids, input_mask, input_seg,
                     start_label=None, end_label=None, seq_mask=None):
    B, S = input_ids.shape
    encoder_rep = toy_encoder(input_ids, input_mask, input_seg, params)   # (B, S, H)
    rep2d = encoder_rep.reshape(B * S, -1)                                # free reshape

    if start_label is None or end_label is None or seq_mask is None:
        # inference branch: no CE/loss work at all
        sp, ep = mrc_head_infer(rep2d, params)
        return sp.reshape(B, S, 2), ep.reshape(B, S, 2)

    loss = mrc_head_loss(rep2d, params,
                         start_label.reshape(-1),
                         end_label.reshape(-1),
                         seq_mask.reshape(-1))
    # avg_se_loss[None].repeat(bsz)
    return jnp.full((B,), loss, dtype=jnp.float32)


def init_params(key, vocab=64, max_seq=16, H=32):
    ks = jax.random.split(key, 8)
    std = 0.02
    return {
        # embeddings in bf16 so encoder_rep is natively bf16 (no extra HBM pass)
        "tok_emb":  (std * jax.random.normal(ks[0], (vocab, H), jnp.float32)).astype(jnp.bfloat16),
        "seg_emb":  (std * jax.random.normal(ks[1], (2, H), jnp.float32)).astype(jnp.bfloat16),
        "pos_emb":  (std * jax.random.normal(ks[2], (max_seq, H), jnp.float32)).astype(jnp.bfloat16),
        # encoder_linear: Linear(H, H)  (stored as (in, out): y = x @ w1 + b1)
        "w1":       std * jax.random.normal(ks[3], (H, H), jnp.float32),
        "b1":       jnp.zeros((1, H), jnp.float32),
        # start_layer / end_layer: Linear(H, 2)  (stored as (in, out))
        "w_start":  std * jax.random.normal(ks[4], (H, 2), jnp.float32),
        "b_start":  jnp.zeros((1, 2), jnp.float32),
        "w_end":    std * jax.random.normal(ks[5], (H, 2), jnp.float32),
        "b_end":    jnp.zeros((1, 2), jnp.float32),
    }


if __name__ == "__main__":
    B, S, H = 2, 8, 32
    key = jax.random.PRNGKey(0)
    kp, k_ids, k_sl, k_el = jax.random.split(key, 4)

    params = init_params(kp, vocab=64, max_seq=S, H=H)

    input_ids = jax.random.randint(k_ids, (B, S), 0, 64, dtype=jnp.int32)
    input_mask = jnp.ones((B, S), jnp.float32)
    input_seg = jnp.zeros((B, S), jnp.int32)
    start_label = jax.random.randint(k_sl, (B, S), 0, 2, dtype=jnp.int32)
    end_label = jax.random.randint(k_el, (B, S), 0, 2, dtype=jnp.int32)
    seq_mask = jnp.ones((B, S), jnp.float32).at[:, -1].set(0.0)   # mask out last token

    # inference branch (probs)
    sp, ep = my_model_forward(params, input_ids, input_mask, input_seg)
    # training branch (loss repeated over batch)
    loss_vec = my_model_forward(params, input_ids, input_mask, input_seg,
                                start_label, end_label, seq_mask)

    jax.block_until_ready((sp, ep, loss_vec))
    assert sp.shape == (B, S, 2) and ep.shape == (B, S, 2) and loss_vec.shape == (B,)
    # probabilities must sum to 1 per token and everything must be finite
    assert bool(jnp.all(jnp.isfinite(sp)) & jnp.all(jnp.isfinite(ep)))
    assert bool(jnp.all(jnp.abs(jnp.sum(sp, axis=-1) - 1.0) < 1e-3))
    assert bool(jnp.all(jnp.isfinite(loss_vec)))
    print("KERNEL_OK")
</pallas_src>

<mosaic_0001>
module attributes {stable_mosaic.version = 11 : i64} {
  func.func @mrc_infer_kernel(%arg0: i32, %arg1: memref<128x32xbf16, #tpu.memory_space<vmem>>, %arg2: memref<32x32xbf16, #tpu.memory_space<vmem>>, %arg3: memref<32x1xf32, #tpu.memory_space<vmem>>, %arg4: memref<4x32xbf16, #tpu.memory_space<vmem>>, %arg5: memref<4x1xf32, #tpu.memory_space<vmem>>, %arg6: memref<2x128xf32, #tpu.memory_space<vmem>>) attributes {dimension_semantics = [#tpu.dimension_semantics<parallel>], iteration_bounds = array<i64: 1>, scalar_prefetch = 0 : i64, scratch_operands = 0 : i64, tpu.core_type = #tpu.core_type<tc>, window_params = [{transform_indices = @transform_0, window_bounds = array<i64: 128, 32>}, {pipeline_mode = #tpu.pipeline_mode<synchronous>, transform_indices = @transform_1, window_bounds = array<i64: 32, 32>}, {pipeline_mode = #tpu.pipeline_mode<synchronous>, transform_indices = @transform_2, window_bounds = array<i64: 32, 1>}, {pipeline_mode = #tpu.pipeline_mode<synchronous>, transform_indices = @transform_3, window_bounds = array<i64: 4, 32>}, {pipeline_mode = #tpu.pipeline_mode<synchronous>, transform_indices = @transform_4, window_bounds = array<i64: 4, 1>}, {transform_indices = @transform_5, window_bounds = array<i64: 2, 128>}]} {
    %c0 = arith.constant 0 : index
    %c0_0 = arith.constant 0 : index
    %0 = vector.load %arg2[%c0, %c0_0] : memref<32x32xbf16, #tpu.memory_space<vmem>>, vector<32x32xbf16>
    %c0_1 = arith.constant 0 : index
    %c0_2 = arith.constant 0 : index
    %1 = vector.load %arg1[%c0_1, %c0_2] : memref<128x32xbf16, #tpu.memory_space<vmem>>, vector<128x32xbf16>
    %cst = arith.constant dense<0.000000e+00> : vector<32x128xf32>
    %2 = tpu.matmul %0, %1, %cst {dimension_numbers = #tpu.dot_dimension_numbers<[1], [1], [0], [0], [0, 0, 1, 0], [], []>} : vector<32x32xbf16>, vector<128x32xbf16>, vector<32x128xf32> -> vector<32x128xf32>
    %c0_3 = arith.constant 0 : index
    %c0_4 = arith.constant 0 : index
    %3 = vector.load %arg3[%c0_3, %c0_4] : memref<32x1xf32, #tpu.memory_space<vmem>>, vector<32x1xf32>
    %4 = vector.broadcast %3 : vector<32x1xf32> to vector<32x128xf32>
    %5 = arith.addf %2, %4 : vector<32x128xf32>
    %6 = arith.truncf %5 : vector<32x128xf32> to vector<32x128xbf16>
    %7 = math.tanh %6 : vector<32x128xbf16>
    %c0_5 = arith.constant 0 : index
    %c0_6 = arith.constant 0 : index
    %8 = vector.load %arg4[%c0_5, %c0_6] : memref<4x32xbf16, #tpu.memory_space<vmem>>, vector<4x32xbf16>
    %cst_7 = arith.constant dense<0.000000e+00> : vector<4x128xf32>
    %9 = tpu.matmul %8, %7, %cst_7 {dimension_numbers = #tpu.dot_dimension_numbers<[1], [0], [0], [1], [0, 0, 1, 1], [], []>} : vector<4x32xbf16>, vector<32x128xbf16>, vector<4x128xf32> -> vector<4x128xf32>
    %c0_8 = arith.constant 0 : index
    %c0_9 = arith.constant 0 : index
    %10 = vector.load %arg5[%c0_8, %c0_9] : memref<4x1xf32, #tpu.memory_space<vmem>>, vector<4x1xf32>
    %11 = vector.broadcast %10 : vector<4x1xf32> to vector<4x128xf32>
    %12 = arith.addf %9, %11 : vector<4x128xf32>
    %13 = vector.extract_strided_slice %12 {offsets = [1, 0], sizes = [1, 128], strides = [1, 1]} : vector<4x128xf32> to vector<1x128xf32>
    %14 = vector.extract_strided_slice %12 {offsets = [0, 0], sizes = [1, 128], strides = [1, 1]} : vector<4x128xf32> to vector<1x128xf32>
    %15 = arith.subf %13, %14 : vector<1x128xf32>
    %16 = vector.extract_strided_slice %12 {offsets = [3, 0], sizes = [1, 128], strides = [1, 1]} : vector<4x128xf32> to vector<1x128xf32>
    %17 = vector.extract_strided_slice %12 {offsets = [2, 0], sizes = [1, 128], strides = [1, 1]} : vector<4x128xf32> to vector<1x128xf32>
    %18 = arith.subf %16, %17 : vector<1x128xf32>
    %cst_10 = arith.constant 0.000000e+00 : f32
    %19 = vector.broadcast %cst_10 : f32 to vector<1x128xf32>
    %20 = arith.subf %19, %15 : vector<1x128xf32>
    %21 = math.exp %20 : vector<1x128xf32>
    %cst_11 = arith.constant 1.000000e+00 : f32
    %22 = vector.broadcast %cst_11 : f32 to vector<1x128xf32>
    %23 = arith.addf %22, %21 : vector<1x128xf32>
    %cst_12 = arith.constant 1.000000e+00 : f32
    %24 = vector.broadcast %cst_12 : f32 to vector<1x128xf32>
    %25 = arith.divf %24, %23 : vector<1x128xf32>
    %cst_13 = arith.constant 0.000000e+00 : f32
    %26 = vector.broadcast %cst_13 : f32 to vector<1x128xf32>
    %27 = arith.subf %26, %18 : vector<1x128xf32>
    %28 = math.exp %27 : vector<1x128xf32>
    %cst_14 = arith.constant 1.000000e+00 : f32
    %29 = vector.broadcast %cst_14 : f32 to vector<1x128xf32>
    %30 = arith.addf %29, %28 : vector<1x128xf32>
    %cst_15 = arith.constant 1.000000e+00 : f32
    %31 = vector.broadcast %cst_15 : f32 to vector<1x128xf32>
    %32 = arith.divf %31, %30 : vector<1x128xf32>
    %33 = tpu.concatenate %25, %32 in 0 : vector<1x128xf32>, vector<1x128xf32> -> vector<2x128xf32>
    %c0_16 = arith.constant 0 : index
    %c0_17 = arith.constant 0 : index
    %34 = vector.load %arg6[%c0_16, %c0_17] : memref<2x128xf32, #tpu.memory_space<vmem>>, vector<2x128xf32>
    tpu.vector_store %arg6[%c0_16, %c0_17], %33 {strides = array<i32>} : memref<2x128xf32, #tpu.memory_space<vmem>>, vector<2x128xf32>,
    return
  }
  func.func @transform_0(%arg0: i32) -> (i32, i32) {
    %c0_i32 = arith.constant 0 : i32
    %c0_i32_0 = arith.constant 0 : i32
    return %arg0, %c0_i32 : i32, i32
  }
  func.func @transform_1(%arg0: i32) -> (i32, i32) {
    %c0_i32 = arith.constant 0 : i32
    %c0_i32_0 = arith.constant 0 : i32
    %c0_i32_1 = arith.constant 0 : i32
    return %c0_i32, %c0_i32_0 : i32, i32
  }
  func.func @transform_2(%arg0: i32) -> (i32, i32) {
    %c0_i32 = arith.constant 0 : i32
    %c0_i32_0 = arith.constant 0 : i32
    %c0_i32_1 = arith.constant 0 : i32
    return %c0_i32, %c0_i32_0 : i32, i32
  }
  func.func @transform_3(%arg0: i32) -> (i32, i32) {
    %c0_i32 = arith.constant 0 : i32
    %c0_i32_0 = arith.constant 0 : i32
    %c0_i32_1 = arith.constant 0 : i32
    return %c0_i32, %c0_i32_0 : i32, i32
  }
  func.func @transform_4(%arg0: i32) -> (i32, i32) {
    %c0_i32 = arith.constant 0 : i32
    %c0_i32_0 = arith.constant 0 : i32
    %c0_i32_1 = arith.constant 0 : i32
    return %c0_i32, %c0_i32_0 : i32, i32
  }
  func.func @transform_5(%arg0: i32) -> (i32, i32) {
    %c0_i32 = arith.constant 0 : i32
    %c0_i32_0 = arith.constant 0 : i32
    return %c0_i32, %arg0 : i32, i32
  }
}

</mosaic_0001>

<llo_original>
// kernel: tpu_custom_call.1
$region0: #{tpu_custom_call.1}
  #allocation0 [shape = 'u32[]', space=smem, size = 0x4, offset = 0x4, fixed_abs, tag = 'smem constant byte address 0x4 - core index']
  #allocation1 [shape = 'u32[144,128]{1,0:T(1,128)}', space=vmem, size = 0x12000, scoped, tag = 'internal scratch']
  %s0 = inlined_call_operand.vmem [shape: bf16[128,32], index: 0, kind: input, shape index: {}]
  %s1 = inlined_call_operand.vmem [shape: bf16[32,32], index: 1, kind: input, shape index: {}]
  %s2 = inlined_call_operand.vmem [shape: f32[32,1], index: 2, kind: input, shape index: {}]
  %s3 = inlined_call_operand.vmem [shape: bf16[4,32], index: 3, kind: input, shape index: {}]
  %s4 = inlined_call_operand.vmem [shape: f32[4,1], index: 4, kind: input, shape index: {}]
  %s5 = inlined_call_operand.hbm [shape: f32[2,128], index: 5, kind: output, shape index: {}]
  %s6 = sld [smem:[#allocation0]]
  $region30: #{tpu_custom_call.1} parent=0
    _
  %s8 = ssub.s32 1, %s6
  %s9 = scalar_select 0, %s8, %s6
  $region1: #{tpu_custom_call.1} parent=0
    #allocation2 [shape = 'u8[1024]{0}', space=vmem, size = 0x400, scoped, tag = 'output window, operand 0, single buffered']
    #allocation3 [shape = 's32[1]{0}', space=sflag, size = 0x4, scoped, tag = 'scoped memory for tpu_custom_call.1']
    %10 = vsyncpa [#allocation3], 0
    // Predicated region
    $region2: #{tpu_custom_call.1} parent=1 // pred_check
      _
    $region3: #{tpu_custom_call.1} parent=1 // pred_check_branch
      %12 = sbr.rel (0) target = $region5
    $region4: #{tpu_custom_call.1} parent=1 // pred_region
      _
    $region5: #{tpu_custom_call.1} parent=1 // pred_fallthru
      _
    // Predicated region
    $region6: #{tpu_custom_call.1} parent=1 // pred_check
      _
    $region7: #{tpu_custom_call.1} parent=1 // pred_check_branch
      %14 = sbr.rel (0) target = $region9
    $region8: #{tpu_custom_call.1} parent=1 // pred_region
      _
    $region9: #{tpu_custom_call.1} parent=1 // pred_fallthru
      _
    // Predicated region
    $region10: #{tpu_custom_call.1} parent=1 // pred_check
      _
    $region11: #{tpu_custom_call.1} parent=1 // pred_check_branch
      %16 = sbr.rel (0) target = $region13
    $region12: #{tpu_custom_call.1} parent=1 // pred_region
      _
    $region13: #{tpu_custom_call.1} parent=1 // pred_fallthru
      _
    // Predicated region
    $region14: #{tpu_custom_call.1} parent=1 // pred_check
      _
    $region15: #{tpu_custom_call.1} parent=1 // pred_check_branch
      %18 = sbr.rel (0) target = $region17
    $region16: #{tpu_custom_call.1} parent=1 // pred_region
      _
    $region17: #{tpu_custom_call.1} parent=1 // pred_fallthru
      _
    // Predicated region
    $region18: #{tpu_custom_call.1} parent=1 // pred_check
      _
    $region19: #{tpu_custom_call.1} parent=1 // pred_check_branch
      %20 = sbr.rel (0) target = $region21
    $region20: #{tpu_custom_call.1} parent=1 // pred_region
      _
    $region21: #{tpu_custom_call.1} parent=1 // pred_fallthru
      _
    %v22 = vld [vmem:[%s1] sm:$0xf]
    %v23 = vld [vmem:[%s1 + $0x4] sm:$0xf]
    %v24 = vld [vmem:[%s1 + $0x8] sm:$0xf]
    %v25 = vld [vmem:[%s1 + $0xc] sm:$0xf]
    %v26 = vld [vmem:[%s0] sm:$0xf]
    %v27 = vld [vmem:[%s0 + $0x4] sm:$0xf]
    %v28 = vld [vmem:[%s0 + $0x8] sm:$0xf]
    %v29 = vld [vmem:[%s0 + $0xc] sm:$0xf]
    %v30 = vld [vmem:[%s0 + $0x10] sm:$0xf]
    %v31 = vld [vmem:[%s0 + $0x14] sm:$0xf]
    %v32 = vld [vmem:[%s0 + $0x18] sm:$0xf]
    %v33 = vld [vmem:[%s0 + $0x1c] sm:$0xf]
    %v34 = vld [vmem:[%s0 + $0x20] sm:$0xf]
    %v35 = vld [vmem:[%s0 + $0x24] sm:$0xf]
    %v36 = vld [vmem:[%s0 + $0x28] sm:$0xf]
    %v37 = vld [vmem:[%s0 + $0x2c] sm:$0xf]
    %v38 = vld [vmem:[%s0 + $0x30] sm:$0xf]
    %v39 = vld [vmem:[%s0 + $0x34] sm:$0xf]
    %v40 = vld [vmem:[%s0 + $0x38] sm:$0xf]
    %v41 = vld [vmem:[%s0 + $0x3c] sm:$0xf]
    %v42 = vld [vmem:[%s2] sm:$0xff]
    %v43 = vld [vmem:[%s2 + $0x8] sm:$0xff]
    %v44 = vld [vmem:[%s2 + $0x10] sm:$0xff]
    %v45 = vld [vmem:[%s2 + $0x18] sm:$0xff]
    %47 = vset.pattern.permute.xlu0 0
    %48 = vperm.xlu0 %47, %v42
    %v49 = vpop.permute.xlu0 %48
    %52 = vset.pattern.permute.xlu0 0
    %53 = vperm.xlu0 %52, %v43
    %v54 = vpop.permute.xlu0 %53
    %57 = vset.pattern.permute.xlu0 0
    %58 = vperm.xlu0 %57, %v44
    %v59 = vpop.permute.xlu0 %58
    %62 = vset.pattern.permute.xlu0 0
    %63 = vperm.xlu0 %62, %v45
    %v64 = vpop.permute.xlu0 %63
    %v70 = vunpack.c.l.b16 %v22
    %v71 = vunpack.c.l.b16 %v23
    %v72 = vunpack.c.l.b16 %v24
    %v73 = vunpack.c.l.b16 %v25
    %v74 = vpack.c.b16 %v71, %v70
    %v75 = vpack.c.b16 %v73, %v72
    %v92 = vunpack.c.l.b16 %v26
    %v93 = vunpack.c.l.b16 %v27
    %v94 = vunpack.c.l.b16 %v28
    %v95 = vunpack.c.l.b16 %v29
    %v96 = vunpack.c.l.b16 %v30
    %v97 = vunpack.c.l.b16 %v31
    %v98 = vunpack.c.l.b16 %v32
    %v99 = vunpack.c.l.b16 %v33
    %v100 = vunpack.c.l.b16 %v34
    %v101 = vunpack.c.l.b16 %v35
    %v102 = vunpack.c.l.b16 %v36
    %v103 = vunpack.c.l.b16 %v37
    %v104 = vunpack.c.l.b16 %v38
    %v105 = vunpack.c.l.b16 %v39
    %v106 = vunpack.c.l.b16 %v40
    %v107 = vunpack.c.l.b16 %v41
    %v108 = vpack.c.b16 %v93, %v92
    %v109 = vpack.c.b16 %v95, %v94
    %v110 = vpack.c.b16 %v97, %v96
    %v111 = vpack.c.b16 %v99, %v98
    %v112 = vpack.c.b16 %v101, %v100
    %v113 = vpack.c.b16 %v103, %v102
    %v114 = vpack.c.b16 %v105, %v104
    %v115 = vpack.c.b16 %v107, %v106
    %vm116 = vcmask 261120
    %v118 = vsel %vm116, %v74, 0
    %v121 = vsel %vm116, %v75, 0
    %v124 = vsel %vm116, %v108, 0
    %v127 = vsel %vm116, %v109, 0
    %v130 = vsel %vm116, %v110, 0
    %v133 = vsel %vm116, %v111, 0
    %v136 = vsel %vm116, %v112, 0
    %v139 = vsel %vm116, %v113, 0
    %v142 = vsel %vm116, %v114, 0
    %v145 = vsel %vm116, %v115, 0
    %147 = vmatprep.subr.bf16.mxu0 0
    %148 = vmatpush1.bf16.xpose.msra.mxu0 %v124
    %149 = vmatprep.subr.bf16.mxu0 0
    %150 = vmatpush1.bf16.xpose.msra.mxu0 %v127
    %151 = vmatprep.subr.bf16.mxu0 0
    %152 = vmatpush1.bf16.xpose.msra.mxu0 %v130
    %153 = vmatprep.subr.bf16.mxu0 0
    %154 = vmatpush1.bf16.xpose.msra.mxu0 %v133
    %155 = vmatprep.subr.bf16.mxu0 0
    %156 = vmatpush1.bf16.xpose.msra.mxu0 %v136
    %157 = vmatprep.subr.bf16.mxu0 0
    %158 = vmatpush1.bf16.xpose.msra.mxu0 %v139
    %159 = vmatprep.subr.bf16.mxu0 0
    %160 = vmatpush1.bf16.xpose.msra.mxu0 %v142
    %161 = vmatprep.subr.bf16.mxu0 0
    %162 = vmatpush1.bf16.xpose.msra.mxu0 %v145
    %163 = vmatprep.subr.bf16.mxu0 0
    %164 = vmatpush1.bf16.xpose.msra.mxu0 0
    %165 = vmatprep.subr.bf16.mxu0 0
    %166 = vmatpush1.bf16.xpose.msra.mxu0 0
    %167 = vmatprep.subr.bf16.mxu0 0
    %168 = vmatpush1.bf16.xpose.msra.mxu0 0
    %169 = vmatprep.subr.bf16.mxu0 0
    %170 = vmatpush1.bf16.xpose.msra.mxu0 0
    %171 = vmatprep.subr.bf16.mxu0 0
    %172 = vmatpush1.bf16.xpose.msra.mxu0 0
    %173 = vmatprep.subr.bf16.mxu0 0
    %174 = vmatpush1.bf16.xpose.msra.mxu0 0
    %175 = vmatprep.subr.bf16.mxu0 0
    %176 = vmatpush1.bf16.xpose.msra.mxu0 0
    %177 = vmatprep.subr.bf16.mxu0 0
    %178 = vmatpush1.bf16.xpose.msra.mxu0 0
    %179 = vmatprep.mubr.bf16.mxu0 0
    %180 = vmatmul.mubr.bf16.gmra.mrb[0].mxu0 %v118
    %v181 = vpop.f32.mrb[0].mxu0
    %v182 = vadd.f32 %v49, %v181
    %v183 = vpop.f32.mrb[0].mxu0
    %v184 = vpop.f32.mrb[0].mxu0
    %v185 = vadd.f32 %v54, %v184
    %v186 = vpop.f32.mrb[0].mxu0
    %187 = vmatprep.mubr.bf16.mxu0 0
    %188 = vmatmul.mubr.bf16.gmra.mrb[0].mxu0 %v121
    %v189 = vpop.f32.mrb[0].mxu0
    %v190 = vadd.f32 %v59, %v189
    %v191 = vpop.f32.mrb[0].mxu0
    %v192 = vpop.f32.mrb[0].mxu0
    %v193 = vadd.f32 %v64, %v192
    %v194 = vpop.f32.mrb[0].mxu0
    %195 = vdwg.mxu0
    %v196 = vpack.c.bf16 %v185, %v182
    %v197 = vpack.c.bf16 %v193, %v190
    %v198 = vtanh.bf16.pop %v196
    %v199 = vtanh.bf16.pop %v197
    %v200 = vld [vmem:[%s3] sm:$0x3]
    %v201 = vld [vmem:[%s4] sm:$0xf]
    %203 = vset.pattern.permute.xlu0 0
    %204 = vperm.xlu0 %203, %v201
    %v205 = vpop.permute.xlu0 %204
    %v208 = vsel %vm116, %v200, 0
    %210 = vmatprep.subr.bf16.mxu0 0
    %211 = vmatpush1.bf16.msra.mxu0 %v198
    %212 = vmatprep.subr.bf16.mxu0 0
    %213 = vmatpush1.bf16.msra.mxu0 %v199
    %214 = vmatprep.subr.bf16.mxu0 0
    %215 = vmatpush1.bf16.msra.mxu0 0
    %216 = vmatprep.subr.bf16.mxu0 0
    %217 = vmatpush1.bf16.msra.mxu0 0
    %218 = vmatprep.subr.bf16.mxu0 0
    %219 = vmatpush1.bf16.msra.mxu0 0
    %220 = vmatprep.subr.bf16.mxu0 0
    %221 = vmatpush1.bf16.msra.mxu0 0
    %222 = vmatprep.subr.bf16.mxu0 0
    %223 = vmatpush1.bf16.msra.mxu0 0
    %224 = vmatprep.subr.bf16.mxu0 0
    %225 = vmatpush1.bf16.msra.mxu0 0
    %226 = vmatprep.subr.bf16.mxu0 0
    %227 = vmatpush1.bf16.msra.mxu0 0
    %228 = vmatprep.subr.bf16.mxu0 0
    %229 = vmatpush1.bf16.msra.mxu0 0
    %230 = vmatprep.subr.bf16.mxu0 0
    %231 = vmatpush1.bf16.msra.mxu0 0
    %232 = vmatprep.subr.bf16.mxu0 0
    %233 = vmatpush1.bf16.msra.mxu0 0
    %234 = vmatprep.subr.bf16.mxu0 0
    %235 = vmatpush1.bf16.msra.mxu0 0
    %236 = vmatprep.subr.bf16.mxu0 0
    %237 = vmatpush1.bf16.msra.mxu0 0
    %238 = vmatprep.subr.bf16.mxu0 0
    %239 = vmatpush1.bf16.msra.mxu0 0
    %240 = vmatprep.subr.bf16.mxu0 0
    %241 = vmatpush1.bf16.msra.mxu0 0
    %242 = vmatprep.mubr.bf16.mxu0 0
    %243 = vmatmul.mubr.bf16.gmra.mrb[0].mxu0 %v208
    %v244 = vpop.f32.mrb[0].mxu0
    %v245 = vadd.f32 %v205, %v244
    %v246 = vpop.f32.mrb[0].mxu0
    %v247 = vpop.f32.mrb[0].mxu0
    %v248 = vpop.f32.mrb[0].mxu0
    %249 = vdwg.mxu0
    %v251 = vrot.slane %v245, 7
    %v253 = vsub.f32 %v245, %v251
    %v254 = vsub.f32 0.0, %v253
    %v255 = vmul.f32 %v254, 1.442695
    %v256 = vpow.pop %v255
    %v257 = vadd.f32 %v256, 1.0
    %v258 = vrcp.pop %v257
    %v259 = vmul.f32 1.0, %v258
    %v261 = vrot.slane %v259, 1
    %v263 = vrot.slane %v259, 2
    %vm265 = vcmask 1040384
    %v266 = vsel %vm265, %v261, %v263
    %267 = vst [vmem:[#allocation2] sm:$0x3] %v266
    // Predicated region
    $region22: #{tpu_custom_call.1} parent=1 // pred_check
      _
    $region23: #{tpu_custom_call.1} parent=1 // pred_check_branch
      %269 = sbr.rel (0) target = $region25
    $region24: #{tpu_custom_call.1} parent=1 // pred_region
      %s271 = ssub.s32 32, 32
      %272 = vsyncadd [#allocation3], %s271
      %s274 = sshll.u32 [#allocation2], 4
      %s275 = int_to_ptr.vmem [resolvable:$true] %s274
      %277 = dma.vmem_to_hbm [thread:$0]  %s275, 32, %s5, [#allocation3]
    $region25: #{tpu_custom_call.1} parent=1 // pred_fallthru
      _
    // Predicated region
    $region26: #{tpu_custom_call.1} parent=1 // pred_check
      _
    $region27: #{tpu_custom_call.1} parent=1 // pred_check_branch
      %279 = sbr.rel (0) target = $region29
    $region28: #{tpu_custom_call.1} parent=1 // pred_region
      %280 = dma.done [#allocation3], 32
    $region29: #{tpu_custom_call.1} parent=1 // pred_fallthru
      _
    %281 = vsyncpa [#allocation3], 1

</llo_original>
